<compile_context>
chip_gen: v6e
topology: v6e:2x2x1
jax: 0.10.0
libtpu: 0.0.40
codegen_flags: <defaults>
</compile_context>

<pallas_src>
import jax
import jax.numpy as jnp
from jax.experimental import pallas as pl
from jax.experimental.pallas import tpu as pltpu  # noqa: F401  (TPU backend)


def addmm_kernel(inp_ref, x1_ref, x2_ref, out_ref):
    # K is tiny (static, =5): an unrolled VPU multiply-accumulate beats the
    # MXU fixed latency at this size and avoids padding K to 128 entirely.
    inp = inp_ref[...]                       # (M, K)  f32
    x1 = x1_ref[...]                         # (K, N)  f32
    acc = x2_ref[...].astype(jnp.float32)    # (M, N)  f32 accumulator = bias
    K = inp.shape[1]
    for k in range(K):                       # unrolled at trace time
        # lane-broadcast column k of inp, sublane-broadcast row k of x1
        acc = acc + inp[:, k:k + 1] * x1[k:k + 1, :]
    out_ref[...] = acc.astype(out_ref.dtype)


@jax.jit
def addmm(inp, x1, x2):
    M, K = inp.shape
    K2, N = x1.shape
    assert K == K2
    assert x2.shape == (M, N)

    cost = pl.CostEstimate(
        flops=2 * M * K * N + M * N,
        transcendentals=0,
        bytes_accessed=4 * (M * K + K * N + 2 * M * N),
    )

    return pl.pallas_call(
        addmm_kernel,
        out_shape=jax.ShapeDtypeStruct((M, N), jnp.float32),
        # No grid, no in_specs/out_specs: single invocation, whole arrays as
        # VMEM blocks (full-array blocks are exempt from (8,128) tiling).
        cost_estimate=cost,
    )(inp, x1, x2)


if __name__ == "__main__":
    key = jax.random.PRNGKey(0)
    k_inp, k_x1, k_x2 = jax.random.split(key, 3)

    M, K, N = 20, 5, 20
    inp = jax.random.normal(k_inp, (M, K), dtype=jnp.float32)
    x1 = jax.random.normal(k_x1, (K, N), dtype=jnp.float32)
    x2 = jax.random.normal(k_x2, (M, N), dtype=jnp.float32)

    out = jax.block_until_ready(addmm(inp, x1, x2))

    # correctness check against plain JAX reference
    ref = inp @ x1 + x2
    assert out.shape == (M, N)
    assert jnp.allclose(out, ref, atol=1e-5, rtol=1e-5)

    print("KERNEL_OK")
</pallas_src>

<mosaic_0001>
module attributes {stable_mosaic.version = 11 : i64} {
  func.func @addmm_kernel(%arg0: memref<20x5xf32, #tpu.memory_space<vmem>>, %arg1: memref<5x20xf32, #tpu.memory_space<vmem>>, %arg2: memref<20x20xf32, #tpu.memory_space<vmem>>, %arg3: memref<20x20xf32, #tpu.memory_space<vmem>>) attributes {dimension_semantics = [], scalar_prefetch = 0 : i64, scratch_operands = 0 : i64, tpu.core_type = #tpu.core_type<tc>} {
    %c0 = arith.constant 0 : index
    %c0_0 = arith.constant 0 : index
    %0 = vector.load %arg0[%c0, %c0_0] : memref<20x5xf32, #tpu.memory_space<vmem>>, vector<20x5xf32>
    %c0_1 = arith.constant 0 : index
    %c0_2 = arith.constant 0 : index
    %1 = vector.load %arg1[%c0_1, %c0_2] : memref<5x20xf32, #tpu.memory_space<vmem>>, vector<5x20xf32>
    %c0_3 = arith.constant 0 : index
    %c0_4 = arith.constant 0 : index
    %2 = vector.load %arg2[%c0_3, %c0_4] : memref<20x20xf32, #tpu.memory_space<vmem>>, vector<20x20xf32>
    %3 = vector.extract_strided_slice %0 {offsets = [0, 0], sizes = [20, 1], strides = [1, 1]} : vector<20x5xf32> to vector<20x1xf32>
    %4 = vector.extract_strided_slice %1 {offsets = [0, 0], sizes = [1, 20], strides = [1, 1]} : vector<5x20xf32> to vector<1x20xf32>
    %5 = vector.broadcast %3 : vector<20x1xf32> to vector<20x20xf32>
    %6 = vector.broadcast %4 : vector<1x20xf32> to vector<20x20xf32>
    %7 = arith.mulf %5, %6 : vector<20x20xf32>
    %8 = arith.addf %2, %7 : vector<20x20xf32>
    %9 = vector.extract_strided_slice %0 {offsets = [0, 1], sizes = [20, 1], strides = [1, 1]} : vector<20x5xf32> to vector<20x1xf32>
    %10 = vector.extract_strided_slice %1 {offsets = [1, 0], sizes = [1, 20], strides = [1, 1]} : vector<5x20xf32> to vector<1x20xf32>
    %11 = vector.broadcast %9 : vector<20x1xf32> to vector<20x20xf32>
    %12 = vector.broadcast %10 : vector<1x20xf32> to vector<20x20xf32>
    %13 = arith.mulf %11, %12 : vector<20x20xf32>
    %14 = arith.addf %8, %13 : vector<20x20xf32>
    %15 = vector.extract_strided_slice %0 {offsets = [0, 2], sizes = [20, 1], strides = [1, 1]} : vector<20x5xf32> to vector<20x1xf32>
    %16 = vector.extract_strided_slice %1 {offsets = [2, 0], sizes = [1, 20], strides = [1, 1]} : vector<5x20xf32> to vector<1x20xf32>
    %17 = vector.broadcast %15 : vector<20x1xf32> to vector<20x20xf32>
    %18 = vector.broadcast %16 : vector<1x20xf32> to vector<20x20xf32>
    %19 = arith.mulf %17, %18 : vector<20x20xf32>
    %20 = arith.addf %14, %19 : vector<20x20xf32>
    %21 = vector.extract_strided_slice %0 {offsets = [0, 3], sizes = [20, 1], strides = [1, 1]} : vector<20x5xf32> to vector<20x1xf32>
    %22 = vector.extract_strided_slice %1 {offsets = [3, 0], sizes = [1, 20], strides = [1, 1]} : vector<5x20xf32> to vector<1x20xf32>
    %23 = vector.broadcast %21 : vector<20x1xf32> to vector<20x20xf32>
    %24 = vector.broadcast %22 : vector<1x20xf32> to vector<20x20xf32>
    %25 = arith.mulf %23, %24 : vector<20x20xf32>
    %26 = arith.addf %20, %25 : vector<20x20xf32>
    %27 = vector.extract_strided_slice %0 {offsets = [0, 4], sizes = [20, 1], strides = [1, 1]} : vector<20x5xf32> to vector<20x1xf32>
    %28 = vector.extract_strided_slice %1 {offsets = [4, 0], sizes = [1, 20], strides = [1, 1]} : vector<5x20xf32> to vector<1x20xf32>
    %29 = vector.broadcast %27 : vector<20x1xf32> to vector<20x20xf32>
    %30 = vector.broadcast %28 : vector<1x20xf32> to vector<20x20xf32>
    %31 = arith.mulf %29, %30 : vector<20x20xf32>
    %32 = arith.addf %26, %31 : vector<20x20xf32>
    %c0_5 = arith.constant 0 : index
    %c0_6 = arith.constant 0 : index
    %33 = vector.load %arg3[%c0_5, %c0_6] : memref<20x20xf32, #tpu.memory_space<vmem>>, vector<20x20xf32>
    tpu.vector_store %arg3[%c0_5, %c0_6], %32 {strides = array<i32>} : memref<20x20xf32, #tpu.memory_space<vmem>>, vector<20x20xf32>,
    return
  }
}

</mosaic_0001>

<llo_original>
// kernel: addmm.1
$region0: #{addmm.1}
  #allocation0 [shape = 'u32[]', space=smem, size = 0x4, offset = 0x4, fixed_abs, tag = 'smem constant byte address 0x4 - core index']
  #allocation1 [shape = 'u32[144,128]{1,0:T(1,128)}', space=vmem, size = 0x12000, scoped, tag = 'internal scratch']
  %s0 = inlined_call_operand.vmem [shape: f32[20,5], index: 0, kind: input, shape index: {}]
  %s1 = inlined_call_operand.vmem [shape: f32[5,20], index: 1, kind: input, shape index: {}]
  %s2 = inlined_call_operand.vmem [shape: f32[20,20], index: 2, kind: input, shape index: {}]
  %s3 = inlined_call_operand.hbm [shape: f32[20,20], index: 3, kind: output, shape index: {}]
  %s4 = sld [smem:[#allocation0]]
  $region22: #{addmm.1} parent=0
    _
  %s6 = ssub.s32 1, %s4
  %s7 = scalar_select 0, %s6, %s4
  $region1: #{addmm.1} parent=0
    #allocation2 [shape = 'u8[12288]{0}', space=vmem, size = 0x3000, scoped, tag = 'output window, operand 0, single buffered']
    #allocation3 [shape = 's32[1]{0}', space=sflag, size = 0x4, scoped, tag = 'scoped memory for addmm.1']
    %8 = vsyncpa [#allocation3], 0
    // Predicated region
    $region2: #{addmm.1} parent=1 // pred_check
      _
    $region3: #{addmm.1} parent=1 // pred_check_branch
      %10 = sbr.rel (0) target = $region5
    $region4: #{addmm.1} parent=1 // pred_region
      _
    $region5: #{addmm.1} parent=1 // pred_fallthru
      _
    // Predicated region
    $region6: #{addmm.1} parent=1 // pred_check
      _
    $region7: #{addmm.1} parent=1 // pred_check_branch
      %12 = sbr.rel (0) target = $region9
    $region8: #{addmm.1} parent=1 // pred_region
      _
    $region9: #{addmm.1} parent=1 // pred_fallthru
      _
    // Predicated region
    $region10: #{addmm.1} parent=1 // pred_check
      _
    $region11: #{addmm.1} parent=1 // pred_check_branch
      %14 = sbr.rel (0) target = $region13
    $region12: #{addmm.1} parent=1 // pred_region
      _
    $region13: #{addmm.1} parent=1 // pred_fallthru
      _
    %v15 = vld [vmem:[%s0] sm:$0xff]
    %v16 = vld [vmem:[%s0 + $0x8] sm:$0xff]
    %v17 = vld [vmem:[%s0 + $0x10] sm:$0xf]
    %v18 = vld [vmem:[%s1] sm:$0x1f]
    %v19 = vld [vmem:[%s2] sm:$0xff]
    %v20 = vld [vmem:[%s2 + $0x8] sm:$0xff]
    %v21 = vld [vmem:[%s2 + $0x10] sm:$0xf]
    %23 = vset.pattern.permute.xlu0 0
    %24 = vperm.xlu0 %23, %v15
    %v25 = vpop.permute.xlu0 %24
    %28 = vset.pattern.permute.xlu0 0
    %29 = vperm.xlu0 %28, %v16
    %v30 = vpop.permute.xlu0 %29
    %33 = vset.pattern.permute.xlu0 0
    %34 = vperm.xlu0 %33, %v17
    %v35 = vpop.permute.xlu0 %34
    %v37 = vlaneseq
    %v38 = vshrl.u32 %v37, 7
    %v39 = vsub.s32 0, %v38
    %v40 = vrot.slane %v18, %v39
    %v41 = vmul.f32 %v25, %v40
    %v42 = vmul.f32 %v30, %v40
    %v43 = vmul.f32 %v35, %v40
    %v44 = vadd.f32 %v19, %v41
    %v45 = vadd.f32 %v20, %v42
    %v46 = vadd.f32 %v21, %v43
    %47 = vset.pattern.permute.xlu0 1
    %48 = vperm.xlu0 %47, %v15
    %v49 = vpop.permute.xlu0 %48
    %51 = vset.pattern.permute.xlu0 1
    %52 = vperm.xlu0 %51, %v16
    %v53 = vpop.permute.xlu0 %52
    %55 = vset.pattern.permute.xlu0 1
    %56 = vperm.xlu0 %55, %v17
    %v57 = vpop.permute.xlu0 %56
    %v59 = vlaneseq
    %v60 = vshrl.u32 %v59, 7
    %v61 = vsub.s32 1, %v60
    %v62 = vrot.slane %v18, %v61
    %v63 = vmul.f32 %v49, %v62
    %v64 = vmul.f32 %v53, %v62
    %v65 = vmul.f32 %v57, %v62
    %v66 = vadd.f32 %v44, %v63
    %v67 = vadd.f32 %v45, %v64
    %v68 = vadd.f32 %v46, %v65
    %69 = vset.pattern.permute.xlu0 2
    %70 = vperm.xlu0 %69, %v15
    %v71 = vpop.permute.xlu0 %70
    %73 = vset.pattern.permute.xlu0 2
    %74 = vperm.xlu0 %73, %v16
    %v75 = vpop.permute.xlu0 %74
    %77 = vset.pattern.permute.xlu0 2
    %78 = vperm.xlu0 %77, %v17
    %v79 = vpop.permute.xlu0 %78
    %v81 = vlaneseq
    %v82 = vshrl.u32 %v81, 7
    %v83 = vsub.s32 2, %v82
    %v84 = vrot.slane %v18, %v83
    %v85 = vmul.f32 %v71, %v84
    %v86 = vmul.f32 %v75, %v84
    %v87 = vmul.f32 %v79, %v84
    %v88 = vadd.f32 %v66, %v85
    %v89 = vadd.f32 %v67, %v86
    %v90 = vadd.f32 %v68, %v87
    %91 = vset.pattern.permute.xlu0 3
    %92 = vperm.xlu0 %91, %v15
    %v93 = vpop.permute.xlu0 %92
    %95 = vset.pattern.permute.xlu0 3
    %96 = vperm.xlu0 %95, %v16
    %v97 = vpop.permute.xlu0 %96
    %99 = vset.pattern.permute.xlu0 3
    %100 = vperm.xlu0 %99, %v17
    %v101 = vpop.permute.xlu0 %100
    %v103 = vlaneseq
    %v104 = vshrl.u32 %v103, 7
    %v105 = vsub.s32 3, %v104
    %v106 = vrot.slane %v18, %v105
    %v107 = vmul.f32 %v93, %v106
    %v108 = vmul.f32 %v97, %v106
    %v109 = vmul.f32 %v101, %v106
    %v110 = vadd.f32 %v88, %v107
    %v111 = vadd.f32 %v89, %v108
    %v112 = vadd.f32 %v90, %v109
    %113 = vset.pattern.permute.xlu0 4
    %114 = vperm.xlu0 %113, %v15
    %v115 = vpop.permute.xlu0 %114
    %117 = vset.pattern.permute.xlu0 4
    %118 = vperm.xlu0 %117, %v16
    %v119 = vpop.permute.xlu0 %118
    %121 = vset.pattern.permute.xlu0 4
    %122 = vperm.xlu0 %121, %v17
    %v123 = vpop.permute.xlu0 %122
    %v125 = vlaneseq
    %v126 = vshrl.u32 %v125, 7
    %v127 = vsub.s32 4, %v126
    %v128 = vrot.slane %v18, %v127
    %v129 = vmul.f32 %v115, %v128
    %v130 = vmul.f32 %v119, %v128
    %v131 = vmul.f32 %v123, %v128
    %v132 = vadd.f32 %v110, %v129
    %v133 = vadd.f32 %v111, %v130
    %v134 = vadd.f32 %v112, %v131
    %vm135 = vcmask 162816
    %136 = vst.msk [vmem:[#allocation2] sm:$0xff] %vm135, %v132
    %137 = vst.msk [vmem:[#allocation2 + $0x8] sm:$0xff] %vm135, %v133
    %vm138 = vcmask 158720
    %139 = vst.msk [vmem:[#allocation2 + $0x10] sm:$0xf] %vm138, %v134
    // Predicated region
    $region14: #{addmm.1} parent=1 // pred_check
      _
    $region15: #{addmm.1} parent=1 // pred_check_branch
      %141 = sbr.rel (0) target = $region17
    $region16: #{addmm.1} parent=1 // pred_region
      %s143 = ssub.s32 384, 384
      %144 = vsyncadd [#allocation3], %s143
      %s145 = sshll.u32 [#allocation2], 4
      %s146 = int_to_ptr.vmem [resolvable:$true] %s145
      %151 = dma.vmem_to_hbm [thread:$0]  %s146, 384, %s3, [#allocation3], 128, 128, 8
    $region17: #{addmm.1} parent=1 // pred_fallthru
      _
    // Predicated region
    $region18: #{addmm.1} parent=1 // pred_check
      _
    $region19: #{addmm.1} parent=1 // pred_check_branch
      %153 = sbr.rel (0) target = $region21
    $region20: #{addmm.1} parent=1 // pred_region
      %154 = dma.done [#allocation3], 384
    $region21: #{addmm.1} parent=1 // pred_fallthru
      _
    %155 = vsyncpa [#allocation3], 1

</llo_original>
